<compile_context>
chip_gen: v5e
topology: v5e:2x2
jax: 0.10.0
libtpu: 0.0.40
codegen_flags: <defaults>
</compile_context>

<pallas_src>
import functools
import math

import jax
import jax.numpy as jnp
from jax import lax
from jax.experimental import pallas as pl
from jax.experimental.pallas import tpu as pltpu


_LANE = 128
_SUBLANE = 16                     # bf16 sublane packing; also a multiple of 8 (f32-safe)
_BASE_TILES = (512, 384, 256, 128)

_VMEM_LIMIT_CACHE = None


def _round_up(v: int, m: int) -> int:
    return ((v + m - 1) // m) * m


def _vmem_limit_bytes() -> int:
    """Generation-aware scoped-VMEM limit (~3/4 of physical per-core VMEM)."""
    global _VMEM_LIMIT_CACHE
    if _VMEM_LIMIT_CACHE is None:
        cap = 64 * 1024 * 1024                      # safe (v7x-sized) fallback
        try:
            info = pltpu.get_tpu_info()
            cap = int(getattr(info, "vmem_capacity_bytes", cap)) or cap
        except Exception:
            pass
        # v7x (64 MiB/TC) -> 48 MiB; v5e/v6e (128 MiB) -> 96 MiB.
        _VMEM_LIMIT_CACHE = max(32 * 1024 * 1024, (cap // 4) * 3)
    return _VMEM_LIMIT_CACHE


def _pick_tile(dim: int, candidates):
    """Pick the tile from `candidates` (decreasing order) minimizing padded size.

    Ties break toward the larger tile (fewer grid steps / less per-step overhead).
    Returns (tile, padded_dim).
    """
    best_t, best_pad = None, None
    for t in candidates:
        padded = _round_up(max(dim, 1), t)
        if best_pad is None or padded < best_pad:
            best_t, best_pad = t, padded
    return best_t, best_pad


def _m_candidates(b: int):
    bg = _round_up(max(b, 1), _SUBLANE)
    cand = set(_BASE_TILES)
    if bg <= 512:
        cand.add(bg)              # exact fit for small batches (e.g. 272 for B=260)
    return tuple(sorted(cand, reverse=True))


def _n_candidates(o: int):
    og = _round_up(max(o, 1), _LANE)
    cand = set(_BASE_TILES)
    if og <= 512:
        cand.add(og)
    return tuple(sorted(cand, reverse=True))


def _k_candidates(f: int):
    fg = _round_up(max(f, 1), _LANE)
    cand = set(_BASE_TILES)
    if fg <= 1024:
        cand.add(fg)              # whole-reduction single K tile when it fits
    return tuple(sorted(cand, reverse=True))


# ----------------------------------------------------------------------------
# Kernels
# ----------------------------------------------------------------------------
def _linear_kernel(x_ref, w_ref, b_ref, o_ref, acc_ref):
    """Multi-K-step tile: output-stationary f32 accumulator, bias folded into init."""
    k = pl.program_id(2)

    @pl.when(k == 0)
    def _init():
        acc_ref[...] = jnp.broadcast_to(b_ref[...], acc_ref.shape)

    # x tile (tm, tk) @ W.T tile (tk, tn): native [M,K] x [K,N], no transposes.
    # Inputs are bf16 (by default) with an f32 accumulator -> single MXU pass.
    acc_ref[...] += jnp.dot(
        x_ref[...], w_ref[...], preferred_element_type=jnp.float32
    )

    @pl.when(k == pl.num_programs(2) - 1)
    def _finalize():
        o_ref[...] = acc_ref[...].astype(o_ref.dtype)


def _linear_kernel_single_k(x_ref, w_ref, b_ref, o_ref):
    """Fast path when the whole reduction fits in one K tile: no scratch, no pl.when."""
    o_ref[...] = (
        jnp.broadcast_to(b_ref[...], o_ref.shape)
        + jnp.dot(x_ref[...], w_ref[...], preferred_element_type=jnp.float32)
    ).astype(o_ref.dtype)


# ----------------------------------------------------------------------------
# Host-side wrappers
# ----------------------------------------------------------------------------
def prepare_linear_params(weight, bias, *, use_bf16=True):
    """One-time (per-model) weight prep, kept OUT of the per-call jit.

    weight: (n_out, n_feature)  -- native PyTorch layout
    bias:   (n_out,)
    Returns:
      w_t: (Fp, Op) weight.T, cast (bf16 by default) and zero-padded to tile multiples
      b_p: (1, Op)  f32 bias, zero-padded
    """
    n_out, n_feature = weight.shape
    assert bias.shape == (n_out,)
    in_dtype = jnp.bfloat16 if use_bf16 else jnp.float32

    _, op = _pick_tile(n_out, _n_candidates(n_out))
    _, fp = _pick_tile(n_feature, _k_candidates(n_feature))

    w_t = jnp.zeros((fp, op), in_dtype)
    w_t = w_t.at[:n_feature, :n_out].set(weight.T.astype(in_dtype))
    b_p = jnp.zeros((1, op), jnp.float32)
    b_p = b_p.at[0, :n_out].set(bias.astype(jnp.float32))
    return w_t, b_p


@functools.partial(jax.jit, static_argnames=("n_out",))
def linear_forward(x, w_t, b_p, *, n_out):
    """y = x @ W.T + b with padded/transposed params from prepare_linear_params.

    x: (B, n_feature); returns (B, n_out) float32.
    """
    b_dim, f_dim = x.shape
    fp, op = w_t.shape

    # Tile selection (all shapes are static Python ints under jit).
    tm, bp = _pick_tile(b_dim, _m_candidates(b_dim))
    tn, op_chk = _pick_tile(n_out, _n_candidates(n_out))
    tk, fp_chk = _pick_tile(f_dim, _k_candidates(f_dim))
    assert op_chk == op and fp_chk == fp, (
        "x / prepared-weight shapes disagree with prepare_linear_params")

    # Keep the 'parallel' grid extent >= 2 when possible so both v7x
    # TensorCores (and the megacore halves on v5e/v6e) get work.
    if (bp // tm == 1 and op // tn == 1 and op >= 2 * _LANE
            and (op // 2) % _LANE == 0):
        tn = op // 2

    grid_m, grid_n, grid_k = bp // tm, op // tn, fp // tk

    # Pad + cast x inside jit (fuses with neighbors; no-op for aligned shapes).
    x_p = x.astype(w_t.dtype)
    if bp != b_dim or fp != f_dim:
        x_p = jnp.pad(x_p, ((0, bp - b_dim), (0, fp - f_dim)))

    in_bytes = jnp.dtype(w_t.dtype).itemsize
    cost = pl.CostEstimate(
        flops=2 * bp * fp * op,
        transcendentals=0,
        bytes_accessed=in_bytes * (bp * fp + fp * op) + 4 * (bp * op + op),
    )

    if grid_k == 1:
        out_p = pl.pallas_call(
            _linear_kernel_single_k,
            out_shape=jax.ShapeDtypeStruct((bp, op), jnp.float32),
            grid_spec=pltpu.PrefetchScalarGridSpec(
                num_scalar_prefetch=0,
                grid=(grid_m, grid_n),
                in_specs=[
                    pl.BlockSpec((tm, tk), lambda i, j: (i, 0)),   # x
                    pl.BlockSpec((tk, tn), lambda i, j: (0, j)),   # W.T  [K, N]
                    pl.BlockSpec((1, tn), lambda i, j: (0, j)),    # bias
                ],
                out_specs=pl.BlockSpec((tm, tn), lambda i, j: (i, j)),
            ),
            compiler_params=pltpu.CompilerParams(
                dimension_semantics=("parallel", "parallel"),
                vmem_limit_bytes=_vmem_limit_bytes(),
            ),
            cost_estimate=cost,
        )(x_p, w_t, b_p)
    else:
        out_p = pl.pallas_call(
            _linear_kernel,
            out_shape=jax.ShapeDtypeStruct((bp, op), jnp.float32),
            grid_spec=pltpu.PrefetchScalarGridSpec(
                num_scalar_prefetch=0,
                grid=(grid_m, grid_n, grid_k),
                in_specs=[
                    pl.BlockSpec((tm, tk), lambda i, j, k: (i, k)),   # x
                    pl.BlockSpec((tk, tn), lambda i, j, k: (k, j)),   # W.T [K, N]
                    pl.BlockSpec((1, tn), lambda i, j, k: (0, j)),    # bias
                ],
                out_specs=pl.BlockSpec((tm, tn), lambda i, j, k: (i, j)),
                scratch_shapes=[pltpu.VMEM((tm, tn), jnp.float32)],
            ),
            compiler_params=pltpu.CompilerParams(
                dimension_semantics=("parallel", "parallel", "arbitrary"),
                vmem_limit_bytes=_vmem_limit_bytes(),
            ),
            cost_estimate=cost,
        )(x_p, w_t, b_p)

    if bp == b_dim and op == n_out:
        return out_p
    return out_p[:b_dim, :n_out]


class PallasLinearNet:
    """Pallas equivalent of LinearNet: y = nn.Linear(n_feature, n_out)(x)."""

    def __init__(self, weight, bias, *, use_bf16=True):
        self.n_out, self.n_feature = weight.shape
        self.w_t, self.b_p = prepare_linear_params(weight, bias, use_bf16=use_bf16)

    def __call__(self, x):
        return linear_forward(x, self.w_t, self.b_p, n_out=self.n_out)


# ----------------------------------------------------------------------------
# Demo / correctness check
# ----------------------------------------------------------------------------
if __name__ == "__main__":

    def make_params(key, n_feature, n_out):
        kw, kb, kx = jax.random.split(key, 3)
        bound = 1.0 / math.sqrt(n_feature)   # PyTorch nn.Linear default init range
        w = jax.random.uniform(kw, (n_out, n_feature), jnp.float32, -bound, bound)
        b = jax.random.uniform(kb, (n_out,), jnp.float32, -bound, bound)
        return w, b, kx

    hi = lax.Precision.HIGHEST

    # --- 1) Small shapes implied by the module: x (batch, n_feature), n_out=1.
    batch, n_feature, n_out = 8, 32, 1
    w, b, kx = make_params(jax.random.PRNGKey(0), n_feature, n_out)
    x = jax.random.normal(kx, (batch, n_feature), jnp.float32)

    net = PallasLinearNet(w, b)                    # bf16 MXU inputs (default)
    y = jax.block_until_ready(net(x))
    assert y.shape == (batch, n_out)

    x_bf = x.astype(jnp.bfloat16).astype(jnp.float32)
    w_bf = w.astype(jnp.bfloat16).astype(jnp.float32)
    y_ref_bf = jnp.dot(x_bf, w_bf.T, precision=hi) + b     # bf16-in / f32-acc ref
    y_ref_f32 = jnp.dot(x, w.T, precision=hi) + b          # pure f32 ref
    assert jnp.allclose(y, y_ref_bf, atol=1e-3, rtol=1e-3)
    assert jnp.allclose(y, y_ref_f32, atol=3e-2, rtol=3e-2)

    # --- 2) Same shapes, strict-f32 path (use_bf16=False).
    net_f32 = PallasLinearNet(w, b, use_bf16=False)
    y32 = jax.block_until_ready(net_f32(x))
    assert jnp.allclose(y32, y_ref_f32, atol=1e-5, rtol=1e-5)

    # --- 3) Larger, unaligned shapes: exercises the multi-K accumulator path and
    #        padding-minimizing tiles (B=260 -> tm=272, F=1536 -> 3 x tk=512).
    batch2, n_feature2, n_out2 = 260, 1536, 384
    w2, b2, kx2 = make_params(jax.random.PRNGKey(1), n_feature2, n_out2)
    x2 = jax.random.normal(kx2, (batch2, n_feature2), jnp.float32)

    net2 = PallasLinearNet(w2, b2)
    y2 = jax.block_until_ready(net2(x2))
    assert y2.shape == (batch2, n_out2)
    y2_ref = jnp.dot(x2.astype(jnp.bfloat16).astype(jnp.float32),
                     w2.T.astype(jnp.bfloat16).astype(jnp.float32),
                     precision=hi) + b2
    assert jnp.allclose(y2, y2_ref, atol=1e-3, rtol=1e-3)

    print("KERNEL_OK")
</pallas_src>

<mosaic_0001>
module attributes {stable_mosaic.version = 11 : i64} {
  func.func @_linear_kernel_single_k(%arg0: i32, %arg1: i32, %arg2: memref<16x128xbf16, #tpu.memory_space<vmem>>, %arg3: memref<128x128xbf16, #tpu.memory_space<vmem>>, %arg4: memref<1x128xf32, #tpu.memory_space<vmem>>, %arg5: memref<16x128xf32, #tpu.memory_space<vmem>>) attributes {dimension_semantics = [#tpu.dimension_semantics<parallel>, #tpu.dimension_semantics<parallel>], iteration_bounds = array<i64: 1, 1>, scalar_prefetch = 0 : i64, scratch_operands = 0 : i64, tpu.core_type = #tpu.core_type<tc>, window_params = [{transform_indices = @transform_0, window_bounds = array<i64: 16, 128>}, {transform_indices = @transform_1, window_bounds = array<i64: 128, 128>}, {transform_indices = @transform_2, window_bounds = array<i64: 1, 128>}, {transform_indices = @transform_3, window_bounds = array<i64: 16, 128>}]} {
    %c0 = arith.constant 0 : index
    %c0_0 = arith.constant 0 : index
    %0 = vector.load %arg4[%c0, %c0_0] : memref<1x128xf32, #tpu.memory_space<vmem>>, vector<1x128xf32>
    %1 = vector.shape_cast %0 : vector<1x128xf32> to vector<1x128xf32>
    %2 = vector.broadcast %1 : vector<1x128xf32> to vector<16x128xf32>
    %c0_1 = arith.constant 0 : index
    %c0_2 = arith.constant 0 : index
    %3 = vector.load %arg2[%c0_1, %c0_2] : memref<16x128xbf16, #tpu.memory_space<vmem>>, vector<16x128xbf16>
    %c0_3 = arith.constant 0 : index
    %c0_4 = arith.constant 0 : index
    %4 = vector.load %arg3[%c0_3, %c0_4] : memref<128x128xbf16, #tpu.memory_space<vmem>>, vector<128x128xbf16>
    %cst = arith.constant dense<0.000000e+00> : vector<16x128xf32>
    %5 = tpu.matmul %3, %4, %cst {dimension_numbers = #tpu.dot_dimension_numbers<[1], [0], [0], [1], [0, 0, 1, 1], [], []>} : vector<16x128xbf16>, vector<128x128xbf16>, vector<16x128xf32> -> vector<16x128xf32>
    %6 = arith.addf %2, %5 : vector<16x128xf32>
    %c0_5 = arith.constant 0 : index
    %c0_6 = arith.constant 0 : index
    %7 = vector.load %arg5[%c0_5, %c0_6] : memref<16x128xf32, #tpu.memory_space<vmem>>, vector<16x128xf32>
    tpu.vector_store %arg5[%c0_5, %c0_6], %6 {strides = array<i32>} : memref<16x128xf32, #tpu.memory_space<vmem>>, vector<16x128xf32>,
    return
  }
  func.func @transform_0(%arg0: i32, %arg1: i32) -> (i32, i32) {
    %c0_i32 = arith.constant 0 : i32
    %c0_i32_0 = arith.constant 0 : i32
    return %arg0, %c0_i32 : i32, i32
  }
  func.func @transform_1(%arg0: i32, %arg1: i32) -> (i32, i32) {
    %c0_i32 = arith.constant 0 : i32
    %c0_i32_0 = arith.constant 0 : i32
    return %c0_i32, %arg1 : i32, i32
  }
  func.func @transform_2(%arg0: i32, %arg1: i32) -> (i32, i32) {
    %c0_i32 = arith.constant 0 : i32
    %c0_i32_0 = arith.constant 0 : i32
    return %c0_i32, %arg1 : i32, i32
  }
  func.func @transform_3(%arg0: i32, %arg1: i32) -> (i32, i32) {
    %c0_i32 = arith.constant 0 : i32
    return %arg0, %arg1 : i32, i32
  }
}

</mosaic_0001>

<llo_original>
// kernel: linear_forward.1
$region0: #{linear_forward.1}
  #allocation0 [shape = 'u32[]', space=smem, size = 0x4, offset = 0x4, fixed_abs, tag = 'smem constant byte address 0x4 - core index']
  #allocation1 [shape = 'u32[72,128]{1,0:T(1,128)}', space=vmem, size = 0x9000, scoped, tag = 'internal scratch']
  %s0 = inlined_call_operand.vmem [shape: bf16[16,128], index: 0, kind: input, shape index: {}]
  %s1 = inlined_call_operand.hbm [shape: bf16[128,128], index: 1, kind: input, shape index: {}]
  %s2 = inlined_call_operand.vmem [shape: f32[1,128], index: 2, kind: input, shape index: {}]
  %s3 = inlined_call_operand.vmem [shape: f32[16,128], index: 3, kind: output, shape index: {}]
  %s4 = sld [smem:[#allocation0]]
  $region26: #{linear_forward.1} parent=0
    _
  %s6 = ssub.s32 1, %s4
  %s7 = scalar_select 0, %s6, %s4
  $region1: #{linear_forward.1} parent=0
    #allocation2 [shape = 'u8[32768]{0}', space=vmem, size = 0x8000, scoped, tag = 'input window, operand 1, single buffered']
    #allocation3 [shape = 's32[1]{0}', space=sflag, size = 0x4, scoped, tag = 'scoped memory for linear_forward.1']
    %8 = vsyncpa [#allocation3], 0
    // Predicated region
    $region2: #{linear_forward.1} parent=1 // pred_check
      _
    $region3: #{linear_forward.1} parent=1 // pred_check_branch
      %10 = sbr.rel (0) target = $region5
    $region4: #{linear_forward.1} parent=1 // pred_region
      _
    $region5: #{linear_forward.1} parent=1 // pred_fallthru
      _
    // Predicated region
    $region6: #{linear_forward.1} parent=1 // pred_check
      _
    $region7: #{linear_forward.1} parent=1 // pred_check_branch
      %12 = sbr.rel (0) target = $region9
    $region8: #{linear_forward.1} parent=1 // pred_region
      %14 = vsyncadd [#allocation3], 0
      %s15 = sshll.u32 %s1, 4
      %s16 = int_to_ptr.hbm [resolvable:$true] %s15
      %s17 = sshll.u32 [#allocation2], 4
      %s18 = int_to_ptr.vmem [resolvable:$true] %s17
      %23 = dma.hbm_to_vmem [thread:$0]  %s16, 1024, %s18, [#allocation3], 64, 64, 4
    $region9: #{linear_forward.1} parent=1 // pred_fallthru
      _
    // Predicated region
    $region10: #{linear_forward.1} parent=1 // pred_check
      _
    $region11: #{linear_forward.1} parent=1 // pred_check_branch
      %25 = sbr.rel (0) target = $region13
    $region12: #{linear_forward.1} parent=1 // pred_region
      _
    $region13: #{linear_forward.1} parent=1 // pred_fallthru
      _
    // Predicated region
    $region14: #{linear_forward.1} parent=1 // pred_check
      _
    $region15: #{linear_forward.1} parent=1 // pred_check_branch
      %27 = sbr.rel (0) target = $region17
    $region16: #{linear_forward.1} parent=1 // pred_region
      %29 = dma.done [#allocation3], 1024
    $region17: #{linear_forward.1} parent=1 // pred_fallthru
      _
    %v30 = vld [vmem:[%s2] sm:$0x1]
    %v32 = vperm.slane %v30, 0
    %v34 = vld [vmem:[%s0] sm:$0xf]
    %v35 = vld [vmem:[%s0 + $0x4] sm:$0xf]
    %v36 = vld [vmem:[#allocation2] sm:$0xf]
    %v37 = vld [vmem:[#allocation2 + $0x4] sm:$0xf]
    %v38 = vld [vmem:[#allocation2 + $0x8] sm:$0xf]
    %v39 = vld [vmem:[#allocation2 + $0xc] sm:$0xf]
    %v40 = vld [vmem:[#allocation2 + $0x10] sm:$0xf]
    %v41 = vld [vmem:[#allocation2 + $0x14] sm:$0xf]
    %v42 = vld [vmem:[#allocation2 + $0x18] sm:$0xf]
    %v43 = vld [vmem:[#allocation2 + $0x1c] sm:$0xf]
    %v44 = vld [vmem:[#allocation2 + $0x20] sm:$0xf]
    %v45 = vld [vmem:[#allocation2 + $0x24] sm:$0xf]
    %v46 = vld [vmem:[#allocation2 + $0x28] sm:$0xf]
    %v47 = vld [vmem:[#allocation2 + $0x2c] sm:$0xf]
    %v48 = vld [vmem:[#allocation2 + $0x30] sm:$0xf]
    %v49 = vld [vmem:[#allocation2 + $0x34] sm:$0xf]
    %v50 = vld [vmem:[#allocation2 + $0x38] sm:$0xf]
    %v51 = vld [vmem:[#allocation2 + $0x3c] sm:$0xf]
    %v54 = vunpack.c.l.b16 %v34
    %v55 = vunpack.c.l.b16 %v35
    %v56 = vpack.c.b16 %v55, %v54
    %v74 = vunpack.c.l.b16 %v36
    %v75 = vunpack.c.l.b16 %v37
    %v76 = vunpack.c.l.b16 %v38
    %v77 = vunpack.c.l.b16 %v39
    %v78 = vunpack.c.l.b16 %v40
    %v79 = vunpack.c.l.b16 %v41
    %v80 = vunpack.c.l.b16 %v42
    %v81 = vunpack.c.l.b16 %v43
    %v82 = vunpack.c.l.b16 %v44
    %v83 = vunpack.c.l.b16 %v45
    %v84 = vunpack.c.l.b16 %v46
    %v85 = vunpack.c.l.b16 %v47
    %v86 = vunpack.c.l.b16 %v48
    %v87 = vunpack.c.l.b16 %v49
    %v88 = vunpack.c.l.b16 %v50
    %v89 = vunpack.c.l.b16 %v51
    %v90 = vpack.c.b16 %v75, %v74
    %v91 = vpack.c.b16 %v77, %v76
    %v92 = vpack.c.b16 %v79, %v78
    %v93 = vpack.c.b16 %v81, %v80
    %v94 = vpack.c.b16 %v83, %v82
    %v95 = vpack.c.b16 %v85, %v84
    %v96 = vpack.c.b16 %v87, %v86
    %v97 = vpack.c.b16 %v89, %v88
    %106 = vmatpush.bf16.msra.mxu0 %v97
    %107 = vmatpush.bf16.msra.mxu0 %v96
    %108 = vmatpush.bf16.msra.mxu0 %v95
    %109 = vmatpush.bf16.msra.mxu0 %v94
    %110 = vmatpush.bf16.msra.mxu0 %v93
    %111 = vmatpush.bf16.msra.mxu0 %v92
    %112 = vmatpush.bf16.msra.mxu0 %v91
    %113 = vmatpush.bf16.msra.mxu0 %v90
    %114 = vmatmul.bf16.gmra.mxu0 %v56
    %v115 = vpop.f32.mrf.mxu0
    %v116 = vadd.f32 0.0, %v115
    %v117 = vpop.f32.mrf.mxu0
    %v118 = vadd.f32 0.0, %v117
    %119 = vdwg.mxu0
    %v120 = vadd.f32 %v32, %v116
    %v121 = vadd.f32 %v32, %v118
    %122 = vst [vmem:[%s3] sm:$0xff] %v120
    %123 = vst [vmem:[%s3 + $0x8] sm:$0xff] %v121
    // Predicated region
    $region18: #{linear_forward.1} parent=1 // pred_check
      _
    $region19: #{linear_forward.1} parent=1 // pred_check_branch
      %125 = sbr.rel (0) target = $region21
    $region20: #{linear_forward.1} parent=1 // pred_region
      _
    $region21: #{linear_forward.1} parent=1 // pred_fallthru
      _
    // Predicated region
    $region22: #{linear_forward.1} parent=1 // pred_check
      _
    $region23: #{linear_forward.1} parent=1 // pred_check_branch
      %127 = sbr.rel (0) target = $region25
    $region24: #{linear_forward.1} parent=1 // pred_region
      _
    $region25: #{linear_forward.1} parent=1 // pred_fallthru
      _
    %128 = vsyncpa [#allocation3], 1

</llo_original>
